<compile_context>
chip_gen: v5e
topology: v5e:2x2
jax: 0.10.0
libtpu: 0.0.40
codegen_flags: <defaults>
</compile_context>

<pallas_src>
import functools

import jax
import jax.numpy as jnp
from jax.experimental import pallas as pl
from jax.experimental.pallas import tpu as pltpu


# ----------------------------- Pallas kernel --------------------------------

def _down_block_kernel(r0_ref, r1_ref, r2_ref, w_ref, scale_ref, shift_ref,
                       out_ref, *, wo, mid, cout, expand):
    """One output row of DownBlock.

    r{0,1,2}_ref : (W+2, Cin) f32   padded input rows 2*oh + {0,1,2}
    w_ref        : (9, Cin, Cpad) bf16   per-tap conv weights, zero-padded cols
    scale_ref    : (1, Cpad) f32    folded BN scale (0 in padding lanes)
    shift_ref    : (1, Cpad) f32    folded BN shift + conv bias (0 in pad lanes)
    out_ref      : (Wo, Cpad) f32
    """
    rows = (r0_ref, r1_ref, r2_ref)
    cpad = out_ref.shape[-1]

    # conv3x3 stride-2: 9 strided taps -> 9 small MXU dots into a 128-wide acc.
    acc = jnp.zeros((wo, cpad), jnp.float32)
    for kh in range(3):
        for kw in range(3):
            tap = rows[kh][pl.ds(kw, wo, stride=2), :]          # (Wo, Cin) f32
            acc = acc + jnp.dot(tap.astype(jnp.bfloat16),
                                w_ref[kh * 3 + kw],
                                preferred_element_type=jnp.float32)

    scale = scale_ref[...]                                       # (1, Cpad)
    shift = shift_ref[...]

    # Dense, lane-aligned store of the whole padded tile.  Padding lanes and
    # (for expand) the pooled-channel lanes come out as relu(shift) here and
    # are either zero (pad) or overwritten below (pooled).
    out_ref[...] = jnp.maximum(acc * scale + shift, 0.0)

    if expand:
        # 2x2/stride-2 max pool of the *unpadded* input, reusing the same rows
        # (padded row 2*oh+1 == unpadded 2*oh, padded col 2*ow+1 == unpadded 2*ow).
        t00 = r1_ref[pl.ds(1, wo, stride=2), :]
        t01 = r1_ref[pl.ds(2, wo, stride=2), :]
        t10 = r2_ref[pl.ds(1, wo, stride=2), :]
        t11 = r2_ref[pl.ds(2, wo, stride=2), :]
        pooled = jnp.maximum(jnp.maximum(t00, t01), jnp.maximum(t10, t11))
        out_ref[:, mid:cout] = jnp.maximum(
            pooled * scale[:, mid:cout] + shift[:, mid:cout], 0.0)


# ------------------------------ JAX wrapper ----------------------------------

def init_down_block_params(key, in_channels, out_channels):
    expand = in_channels < out_channels
    mid = out_channels - in_channels if expand else out_channels
    k1, k2, k3, k4, k5, k6 = jax.random.split(key, 6)
    fan_in = in_channels * 9
    bound = 1.0 / (fan_in ** 0.5)
    return {
        "w": jax.random.uniform(k1, (mid, in_channels, 3, 3), jnp.float32,
                                -bound, bound),          # OIHW, like PyTorch
        "b": jax.random.uniform(k2, (mid,), jnp.float32, -bound, bound),
        "gamma": jax.random.uniform(k3, (out_channels,), jnp.float32, 0.5, 1.5),
        "beta": jax.random.uniform(k4, (out_channels,), jnp.float32, -0.5, 0.5),
        "mean": jax.random.uniform(k5, (out_channels,), jnp.float32, -0.5, 0.5),
        "var": jax.random.uniform(k6, (out_channels,), jnp.float32, 0.5, 1.5),
    }


def down_block_forward(x_nchw, params, in_channels, out_channels, bn_eps):
    """Pallas implementation of DownBlock.forward (inference-mode BatchNorm)."""
    expand = in_channels < out_channels
    mid = out_channels - in_channels if expand else out_channels

    N, C, H, W = x_nchw.shape
    assert C == in_channels
    if expand:
        assert H % 2 == 0 and W % 2 == 0, "EDANet DownBlock expects even H/W"

    Ho = (H + 2 - 3) // 2 + 1
    Wo = (W + 2 - 3) // 2 + 1

    # NHWC + spatial zero pad (glue; see TODO at top of file).
    x = jnp.transpose(x_nchw, (0, 2, 3, 1)).astype(jnp.float32)
    xp = jnp.pad(x, ((0, 0), (1, 1), (1, 1), (0, 0)))        # (N, H+2, W+2, C)

    cpad = ((out_channels + 127) // 128) * 128               # lane-dense channels

    # Per-tap conv weights, tap index = kh*3 + kw, cols padded to cpad, bf16.
    w_taps = jnp.transpose(params["w"], (2, 3, 1, 0)).reshape(9, C, mid)
    w_pad = jnp.zeros((9, C, cpad), jnp.float32).at[:, :, :mid].set(w_taps)
    w_pad = w_pad.astype(jnp.bfloat16)

    # Fold inference-BN (and the conv bias for channels [0, mid)) into
    # per-channel scale/shift; padding lanes get (0, 0) -> relu(0) = 0.
    scale = params["gamma"] * jax.lax.rsqrt(params["var"] + bn_eps)
    shift = params["beta"] - params["mean"] * scale
    shift = shift.at[:mid].add(params["b"] * scale[:mid])
    scale_pad = jnp.zeros((1, cpad), jnp.float32).at[0, :out_channels].set(scale)
    shift_pad = jnp.zeros((1, cpad), jnp.float32).at[0, :out_channels].set(shift)

    kernel = functools.partial(_down_block_kernel, wo=Wo, mid=mid,
                               cout=out_channels, expand=expand)

    # Per-step VMEM footprint (double-buffered rows + output, resident params).
    row_bytes = (W + 2) * C * 4
    step_bytes = (2 * (3 * row_bytes + Wo * cpad * 4)
                  + 2 * (9 * C * cpad * 2 + 2 * cpad * 4))
    vmem_limit = int(min(max(4 * step_bytes, 4 << 20), 32 << 20))

    def row_spec(kh):
        return pl.BlockSpec((None, None, W + 2, C),
                            lambda n, oh, kh=kh: (n, 2 * oh + kh, 0, 0))

    const3 = lambda n, oh: (0, 0, 0)
    const2 = lambda n, oh: (0, 0)

    out4 = pl.pallas_call(
        kernel,
        out_shape=jax.ShapeDtypeStruct((N, Ho, Wo, cpad), jnp.float32),
        grid=(N, Ho),
        in_specs=[
            row_spec(0), row_spec(1), row_spec(2),
            pl.BlockSpec((9, C, cpad), const3),      # weights, VMEM-resident
            pl.BlockSpec((1, cpad), const2),         # scale
            pl.BlockSpec((1, cpad), const2),         # shift
        ],
        out_specs=pl.BlockSpec((None, None, Wo, cpad),
                               lambda n, oh: (n, oh, 0, 0)),
        compiler_params=pltpu.CompilerParams(
            dimension_semantics=("parallel", "parallel"),
            vmem_limit_bytes=vmem_limit),
    )(xp, xp, xp, w_pad, scale_pad, shift_pad)

    y = out4[:, :, :, :out_channels]                 # drop channel padding
    return jnp.transpose(y, (0, 3, 1, 2))            # back to NCHW


# -------------------------- pure-JAX reference -------------------------------

def down_block_reference(x_nchw, params, in_channels, out_channels, bn_eps):
    expand = in_channels < out_channels
    y = jax.lax.conv_general_dilated(
        x_nchw, params["w"], window_strides=(2, 2), padding=((1, 1), (1, 1)),
        dimension_numbers=("NCHW", "OIHW", "NCHW"))
    y = y + params["b"][None, :, None, None]
    if expand:
        z = jax.lax.reduce_window(x_nchw, -jnp.inf, jax.lax.max,
                                  (1, 1, 2, 2), (1, 1, 2, 2), "VALID")
        y = jnp.concatenate([y, z], axis=1)
    scale = params["gamma"] / jnp.sqrt(params["var"] + bn_eps)
    shift = params["beta"] - params["mean"] * scale
    y = y * scale[None, :, None, None] + shift[None, :, None, None]
    return jnp.maximum(y, 0.0)


# ----------------------------------- main ------------------------------------

if __name__ == "__main__":
    key = jax.random.PRNGKey(0)
    bn_eps = 1e-5

    # expand case (in_channels < out_channels), like EDANet's stem downsample
    N, Cin, Cout, H, W = 2, 4, 8, 16, 16
    kx, kp = jax.random.split(key)
    x = jax.random.normal(kx, (N, Cin, H, W), jnp.float32)
    params = init_down_block_params(kp, Cin, Cout)

    out = down_block_forward(x, params, Cin, Cout, bn_eps)
    out = jax.block_until_ready(out)
    ref = down_block_reference(x, params, Cin, Cout, bn_eps)
    assert out.shape == (N, Cout, H // 2, W // 2)
    # bf16 MXU operands -> loosened tolerance vs the f32 reference
    assert jnp.allclose(out, ref, atol=5e-2, rtol=5e-2)

    # non-expand case (in_channels >= out_channels): conv -> BN -> ReLU only
    Cin2, Cout2 = 8, 8
    kx2, kp2 = jax.random.split(kp)
    x2 = jax.random.normal(kx2, (N, Cin2, H, W), jnp.float32)
    params2 = init_down_block_params(kp2, Cin2, Cout2)

    out2 = down_block_forward(x2, params2, Cin2, Cout2, bn_eps)
    out2 = jax.block_until_ready(out2)
    ref2 = down_block_reference(x2, params2, Cin2, Cout2, bn_eps)
    assert out2.shape == (N, Cout2, H // 2, W // 2)
    assert jnp.allclose(out2, ref2, atol=5e-2, rtol=5e-2)

    print("KERNEL_OK")
</pallas_src>

<mosaic_0001>
module attributes {stable_mosaic.version = 11 : i64} {
  func.func @_down_block_kernel(%arg0: i32, %arg1: i32, %arg2: memref<1x1x18x4xf32, #tpu.memory_space<vmem>>, %arg3: memref<1x1x18x4xf32, #tpu.memory_space<vmem>>, %arg4: memref<1x1x18x4xf32, #tpu.memory_space<vmem>>, %arg5: memref<9x4x128xbf16, #tpu.memory_space<vmem>>, %arg6: memref<1x128xf32, #tpu.memory_space<vmem>>, %arg7: memref<1x128xf32, #tpu.memory_space<vmem>>, %arg8: memref<1x1x8x128xf32, #tpu.memory_space<vmem>>) attributes {dimension_semantics = [#tpu.dimension_semantics<parallel>, #tpu.dimension_semantics<parallel>], iteration_bounds = array<i64: 2, 8>, scalar_prefetch = 0 : i64, scratch_operands = 0 : i64, tpu.core_type = #tpu.core_type<tc>, window_params = [{transform_indices = @transform_0, window_bounds = array<i64: 1, 1, 18, 4>}, {transform_indices = @transform_1, window_bounds = array<i64: 1, 1, 18, 4>}, {transform_indices = @transform_2, window_bounds = array<i64: 1, 1, 18, 4>}, {pipeline_mode = #tpu.pipeline_mode<synchronous>, transform_indices = @transform_3, window_bounds = array<i64: 9, 4, 128>}, {pipeline_mode = #tpu.pipeline_mode<synchronous>, transform_indices = @transform_4, window_bounds = array<i64: 1, 128>}, {pipeline_mode = #tpu.pipeline_mode<synchronous>, transform_indices = @transform_5, window_bounds = array<i64: 1, 128>}, {transform_indices = @transform_6, window_bounds = array<i64: 1, 1, 8, 128>}]} {
    %cst = arith.constant 0.000000e+00 : f32
    %0 = vector.broadcast %cst : f32 to vector<8x128xf32>
    %c0 = arith.constant 0 : index
    %c0_0 = arith.constant 0 : index
    %c0_1 = arith.constant 0 : index
    %c0_2 = arith.constant 0 : index
    %1 = tpu.strided_load %arg2[%c0, %c0_0, %c0_1, %c0_2] {strides = array<i32: 1, 1, 2, 1>} : memref<1x1x18x4xf32, #tpu.memory_space<vmem>>, vector<1x1x8x4xf32>
    %2 = vector.shape_cast %1 : vector<1x1x8x4xf32> to vector<8x4xf32>
    %3 = arith.truncf %2 : vector<8x4xf32> to vector<8x4xbf16>
    %c0_3 = arith.constant 0 : index
    %c0_4 = arith.constant 0 : index
    %c0_5 = arith.constant 0 : index
    %4 = vector.load %arg5[%c0_3, %c0_4, %c0_5] : memref<9x4x128xbf16, #tpu.memory_space<vmem>>, vector<1x4x128xbf16>
    %5 = vector.shape_cast %4 : vector<1x4x128xbf16> to vector<4x128xbf16>
    %cst_6 = arith.constant dense<0.000000e+00> : vector<8x128xf32>
    %6 = tpu.matmul %3, %5, %cst_6 {dimension_numbers = #tpu.dot_dimension_numbers<[1], [0], [0], [1], [0, 0, 1, 1], [], []>} : vector<8x4xbf16>, vector<4x128xbf16>, vector<8x128xf32> -> vector<8x128xf32>
    %7 = arith.addf %0, %6 : vector<8x128xf32>
    %c0_7 = arith.constant 0 : index
    %c0_8 = arith.constant 0 : index
    %c1 = arith.constant 1 : index
    %c0_9 = arith.constant 0 : index
    %8 = tpu.strided_load %arg2[%c0_7, %c0_8, %c1, %c0_9] {strides = array<i32: 1, 1, 2, 1>} : memref<1x1x18x4xf32, #tpu.memory_space<vmem>>, vector<1x1x8x4xf32>
    %9 = vector.shape_cast %8 : vector<1x1x8x4xf32> to vector<8x4xf32>
    %10 = arith.truncf %9 : vector<8x4xf32> to vector<8x4xbf16>
    %c1_10 = arith.constant 1 : index
    %c0_11 = arith.constant 0 : index
    %c0_12 = arith.constant 0 : index
    %11 = vector.load %arg5[%c1_10, %c0_11, %c0_12] : memref<9x4x128xbf16, #tpu.memory_space<vmem>>, vector<1x4x128xbf16>
    %12 = vector.shape_cast %11 : vector<1x4x128xbf16> to vector<4x128xbf16>
    %cst_13 = arith.constant dense<0.000000e+00> : vector<8x128xf32>
    %13 = tpu.matmul %10, %12, %cst_13 {dimension_numbers = #tpu.dot_dimension_numbers<[1], [0], [0], [1], [0, 0, 1, 1], [], []>} : vector<8x4xbf16>, vector<4x128xbf16>, vector<8x128xf32> -> vector<8x128xf32>
    %14 = arith.addf %7, %13 : vector<8x128xf32>
    %c0_14 = arith.constant 0 : index
    %c0_15 = arith.constant 0 : index
    %c2 = arith.constant 2 : index
    %c0_16 = arith.constant 0 : index
    %15 = tpu.strided_load %arg2[%c0_14, %c0_15, %c2, %c0_16] {strides = array<i32: 1, 1, 2, 1>} : memref<1x1x18x4xf32, #tpu.memory_space<vmem>>, vector<1x1x8x4xf32>
    %16 = vector.shape_cast %15 : vector<1x1x8x4xf32> to vector<8x4xf32>
    %17 = arith.truncf %16 : vector<8x4xf32> to vector<8x4xbf16>
    %c2_17 = arith.constant 2 : index
    %c0_18 = arith.constant 0 : index
    %c0_19 = arith.constant 0 : index
    %18 = vector.load %arg5[%c2_17, %c0_18, %c0_19] : memref<9x4x128xbf16, #tpu.memory_space<vmem>>, vector<1x4x128xbf16>
    %19 = vector.shape_cast %18 : vector<1x4x128xbf16> to vector<4x128xbf16>
    %cst_20 = arith.constant dense<0.000000e+00> : vector<8x128xf32>
    %20 = tpu.matmul %17, %19, %cst_20 {dimension_numbers = #tpu.dot_dimension_numbers<[1], [0], [0], [1], [0, 0, 1, 1], [], []>} : vector<8x4xbf16>, vector<4x128xbf16>, vector<8x128xf32> -> vector<8x128xf32>
    %21 = arith.addf %14, %20 : vector<8x128xf32>
    %c0_21 = arith.constant 0 : index
    %c0_22 = arith.constant 0 : index
    %c0_23 = arith.constant 0 : index
    %c0_24 = arith.constant 0 : index
    %22 = tpu.strided_load %arg3[%c0_21, %c0_22, %c0_23, %c0_24] {strides = array<i32: 1, 1, 2, 1>} : memref<1x1x18x4xf32, #tpu.memory_space<vmem>>, vector<1x1x8x4xf32>
    %23 = vector.shape_cast %22 : vector<1x1x8x4xf32> to vector<8x4xf32>
    %24 = arith.truncf %23 : vector<8x4xf32> to vector<8x4xbf16>
    %c3 = arith.constant 3 : index
    %c0_25 = arith.constant 0 : index
    %c0_26 = arith.constant 0 : index
    %25 = vector.load %arg5[%c3, %c0_25, %c0_26] : memref<9x4x128xbf16, #tpu.memory_space<vmem>>, vector<1x4x128xbf16>
    %26 = vector.shape_cast %25 : vector<1x4x128xbf16> to vector<4x128xbf16>
    %cst_27 = arith.constant dense<0.000000e+00> : vector<8x128xf32>
    %27 = tpu.matmul %24, %26, %cst_27 {dimension_numbers = #tpu.dot_dimension_numbers<[1], [0], [0], [1], [0, 0, 1, 1], [], []>} : vector<8x4xbf16>, vector<4x128xbf16>, vector<8x128xf32> -> vector<8x128xf32>
    %28 = arith.addf %21, %27 : vector<8x128xf32>
    %c0_28 = arith.constant 0 : index
    %c0_29 = arith.constant 0 : index
    %c1_30 = arith.constant 1 : index
    %c0_31 = arith.constant 0 : index
    %29 = tpu.strided_load %arg3[%c0_28, %c0_29, %c1_30, %c0_31] {strides = array<i32: 1, 1, 2, 1>} : memref<1x1x18x4xf32, #tpu.memory_space<vmem>>, vector<1x1x8x4xf32>
    %30 = vector.shape_cast %29 : vector<1x1x8x4xf32> to vector<8x4xf32>
    %31 = arith.truncf %30 : vector<8x4xf32> to vector<8x4xbf16>
    %c4 = arith.constant 4 : index
    %c0_32 = arith.constant 0 : index
    %c0_33 = arith.constant 0 : index
    %32 = vector.load %arg5[%c4, %c0_32, %c0_33] : memref<9x4x128xbf16, #tpu.memory_space<vmem>>, vector<1x4x128xbf16>
    %33 = vector.shape_cast %32 : vector<1x4x128xbf16> to vector<4x128xbf16>
    %cst_34 = arith.constant dense<0.000000e+00> : vector<8x128xf32>
    %34 = tpu.matmul %31, %33, %cst_34 {dimension_numbers = #tpu.dot_dimension_numbers<[1], [0], [0], [1], [0, 0, 1, 1], [], []>} : vector<8x4xbf16>, vector<4x128xbf16>, vector<8x128xf32> -> vector<8x128xf32>
    %35 = arith.addf %28, %34 : vector<8x128xf32>
    %c0_35 = arith.constant 0 : index
    %c0_36 = arith.constant 0 : index
    %c2_37 = arith.constant 2 : index
    %c0_38 = arith.constant 0 : index
    %36 = tpu.strided_load %arg3[%c0_35, %c0_36, %c2_37, %c0_38] {strides = array<i32: 1, 1, 2, 1>} : memref<1x1x18x4xf32, #tpu.memory_space<vmem>>, vector<1x1x8x4xf32>
    %37 = vector.shape_cast %36 : vector<1x1x8x4xf32> to vector<8x4xf32>
    %38 = arith.truncf %37 : vector<8x4xf32> to vector<8x4xbf16>
    %c5 = arith.constant 5 : index
    %c0_39 = arith.constant 0 : index
    %c0_40 = arith.constant 0 : index
    %39 = vector.load %arg5[%c5, %c0_39, %c0_40] : memref<9x4x128xbf16, #tpu.memory_space<vmem>>, vector<1x4x128xbf16>
    %40 = vector.shape_cast %39 : vector<1x4x128xbf16> to vector<4x128xbf16>
    %cst_41 = arith.constant dense<0.000000e+00> : vector<8x128xf32>
    %41 = tpu.matmul %38, %40, %cst_41 {dimension_numbers = #tpu.dot_dimension_numbers<[1], [0], [0], [1], [0, 0, 1, 1], [], []>} : vector<8x4xbf16>, vector<4x128xbf16>, vector<8x128xf32> -> vector<8x128xf32>
    %42 = arith.addf %35, %41 : vector<8x128xf32>
    %c0_42 = arith.constant 0 : index
    %c0_43 = arith.constant 0 : index
    %c0_44 = arith.constant 0 : index
    %c0_45 = arith.constant 0 : index
    %43 = tpu.strided_load %arg4[%c0_42, %c0_43, %c0_44, %c0_45] {strides = array<i32: 1, 1, 2, 1>} : memref<1x1x18x4xf32, #tpu.memory_space<vmem>>, vector<1x1x8x4xf32>
    %44 = vector.shape_cast %43 : vector<1x1x8x4xf32> to vector<8x4xf32>
    %45 = arith.truncf %44 : vector<8x4xf32> to vector<8x4xbf16>
    %c6 = arith.constant 6 : index
    %c0_46 = arith.constant 0 : index
    %c0_47 = arith.constant 0 : index
    %46 = vector.load %arg5[%c6, %c0_46, %c0_47] : memref<9x4x128xbf16, #tpu.memory_space<vmem>>, vector<1x4x128xbf16>
    %47 = vector.shape_cast %46 : vector<1x4x128xbf16> to vector<4x128xbf16>
    %cst_48 = arith.constant dense<0.000000e+00> : vector<8x128xf32>
    %48 = tpu.matmul %45, %47, %cst_48 {dimension_numbers = #tpu.dot_dimension_numbers<[1], [0], [0], [1], [0, 0, 1, 1], [], []>} : vector<8x4xbf16>, vector<4x128xbf16>, vector<8x128xf32> -> vector<8x128xf32>
    %49 = arith.addf %42, %48 : vector<8x128xf32>
    %c0_49 = arith.constant 0 : index
    %c0_50 = arith.constant 0 : index
    %c1_51 = arith.constant 1 : index
    %c0_52 = arith.constant 0 : index
    %50 = tpu.strided_load %arg4[%c0_49, %c0_50, %c1_51, %c0_52] {strides = array<i32: 1, 1, 2, 1>} : memref<1x1x18x4xf32, #tpu.memory_space<vmem>>, vector<1x1x8x4xf32>
    %51 = vector.shape_cast %50 : vector<1x1x8x4xf32> to vector<8x4xf32>
    %52 = arith.truncf %51 : vector<8x4xf32> to vector<8x4xbf16>
    %c7 = arith.constant 7 : index
    %c0_53 = arith.constant 0 : index
    %c0_54 = arith.constant 0 : index
    %53 = vector.load %arg5[%c7, %c0_53, %c0_54] : memref<9x4x128xbf16, #tpu.memory_space<vmem>>, vector<1x4x128xbf16>
    %54 = vector.shape_cast %53 : vector<1x4x128xbf16> to vector<4x128xbf16>
    %cst_55 = arith.constant dense<0.000000e+00> : vector<8x128xf32>
    %55 = tpu.matmul %52, %54, %cst_55 {dimension_numbers = #tpu.dot_dimension_numbers<[1], [0], [0], [1], [0, 0, 1, 1], [], []>} : vector<8x4xbf16>, vector<4x128xbf16>, vector<8x128xf32> -> vector<8x128xf32>
    %56 = arith.addf %49, %55 : vector<8x128xf32>
    %c0_56 = arith.constant 0 : index
    %c0_57 = arith.constant 0 : index
    %c2_58 = arith.constant 2 : index
    %c0_59 = arith.constant 0 : index
    %57 = tpu.strided_load %arg4[%c0_56, %c0_57, %c2_58, %c0_59] {strides = array<i32: 1, 1, 2, 1>} : memref<1x1x18x4xf32, #tpu.memory_space<vmem>>, vector<1x1x8x4xf32>
    %58 = vector.shape_cast %57 : vector<1x1x8x4xf32> to vector<8x4xf32>
    %59 = arith.truncf %58 : vector<8x4xf32> to vector<8x4xbf16>
    %c8 = arith.constant 8 : index
    %c0_60 = arith.constant 0 : index
    %c0_61 = arith.constant 0 : index
    %60 = vector.load %arg5[%c8, %c0_60, %c0_61] : memref<9x4x128xbf16, #tpu.memory_space<vmem>>, vector<1x4x128xbf16>
    %61 = vector.shape_cast %60 : vector<1x4x128xbf16> to vector<4x128xbf16>
    %cst_62 = arith.constant dense<0.000000e+00> : vector<8x128xf32>
    %62 = tpu.matmul %59, %61, %cst_62 {dimension_numbers = #tpu.dot_dimension_numbers<[1], [0], [0], [1], [0, 0, 1, 1], [], []>} : vector<8x4xbf16>, vector<4x128xbf16>, vector<8x128xf32> -> vector<8x128xf32>
    %63 = arith.addf %56, %62 : vector<8x128xf32>
    %c0_63 = arith.constant 0 : index
    %c0_64 = arith.constant 0 : index
    %64 = vector.load %arg6[%c0_63, %c0_64] : memref<1x128xf32, #tpu.memory_space<vmem>>, vector<1x128xf32>
    %c0_65 = arith.constant 0 : index
    %c0_66 = arith.constant 0 : index
    %65 = vector.load %arg7[%c0_65, %c0_66] : memref<1x128xf32, #tpu.memory_space<vmem>>, vector<1x128xf32>
    %66 = vector.broadcast %64 : vector<1x128xf32> to vector<8x128xf32>
    %67 = arith.mulf %63, %66 : vector<8x128xf32>
    %68 = vector.broadcast %65 : vector<1x128xf32> to vector<8x128xf32>
    %69 = arith.addf %67, %68 : vector<8x128xf32>
    %cst_67 = arith.constant 0.000000e+00 : f32
    %70 = vector.broadcast %cst_67 : f32 to vector<8x128xf32>
    %71 = arith.maximumf %69, %70 : vector<8x128xf32>
    %c0_68 = arith.constant 0 : index
    %c0_69 = arith.constant 0 : index
    %c0_70 = arith.constant 0 : index
    %c0_71 = arith.constant 0 : index
    %72 = vector.load %arg8[%c0_68, %c0_69, %c0_70, %c0_71] : memref<1x1x8x128xf32, #tpu.memory_space<vmem>>, vector<1x1x8x128xf32>
    %73 = vector.shape_cast %72 : vector<1x1x8x128xf32> to vector<8x128xf32>
    %74 = vector.shape_cast %71 : vector<8x128xf32> to vector<1x1x8x128xf32>
    tpu.vector_store %arg8[%c0_68, %c0_69, %c0_70, %c0_71], %74 {strides = array<i32>} : memref<1x1x8x128xf32, #tpu.memory_space<vmem>>, vector<1x1x8x128xf32>,
    %c0_72 = arith.constant 0 : index
    %c0_73 = arith.constant 0 : index
    %c1_74 = arith.constant 1 : index
    %c0_75 = arith.constant 0 : index
    %75 = tpu.strided_load %arg3[%c0_72, %c0_73, %c1_74, %c0_75] {strides = array<i32: 1, 1, 2, 1>} : memref<1x1x18x4xf32, #tpu.memory_space<vmem>>, vector<1x1x8x4xf32>
    %76 = vector.shape_cast %75 : vector<1x1x8x4xf32> to vector<8x4xf32>
    %c0_76 = arith.constant 0 : index
    %c0_77 = arith.constant 0 : index
    %c2_78 = arith.constant 2 : index
    %c0_79 = arith.constant 0 : index
    %77 = tpu.strided_load %arg3[%c0_76, %c0_77, %c2_78, %c0_79] {strides = array<i32: 1, 1, 2, 1>} : memref<1x1x18x4xf32, #tpu.memory_space<vmem>>, vector<1x1x8x4xf32>
    %78 = vector.shape_cast %77 : vector<1x1x8x4xf32> to vector<8x4xf32>
    %c0_80 = arith.constant 0 : index
    %c0_81 = arith.constant 0 : index
    %c1_82 = arith.constant 1 : index
    %c0_83 = arith.constant 0 : index
    %79 = tpu.strided_load %arg4[%c0_80, %c0_81, %c1_82, %c0_83] {strides = array<i32: 1, 1, 2, 1>} : memref<1x1x18x4xf32, #tpu.memory_space<vmem>>, vector<1x1x8x4xf32>
    %80 = vector.shape_cast %79 : vector<1x1x8x4xf32> to vector<8x4xf32>
    %c0_84 = arith.constant 0 : index
    %c0_85 = arith.constant 0 : index
    %c2_86 = arith.constant 2 : index
    %c0_87 = arith.constant 0 : index
    %81 = tpu.strided_load %arg4[%c0_84, %c0_85, %c2_86, %c0_87] {strides = array<i32: 1, 1, 2, 1>} : memref<1x1x18x4xf32, #tpu.memory_space<vmem>>, vector<1x1x8x4xf32>
    %82 = vector.shape_cast %81 : vector<1x1x8x4xf32> to vector<8x4xf32>
    %83 = arith.maximumf %76, %78 : vector<8x4xf32>
    %84 = arith.maximumf %80, %82 : vector<8x4xf32>
    %85 = arith.maximumf %83, %84 : vector<8x4xf32>
    %86 = vector.extract_strided_slice %64 {offsets = [0, 4], sizes = [1, 4], strides = [1, 1]} : vector<1x128xf32> to vector<1x4xf32>
    %87 = vector.broadcast %86 : vector<1x4xf32> to vector<8x4xf32>
    %88 = arith.mulf %85, %87 : vector<8x4xf32>
    %89 = vector.extract_strided_slice %65 {offsets = [0, 4], sizes = [1, 4], strides = [1, 1]} : vector<1x128xf32> to vector<1x4xf32>
    %90 = vector.broadcast %89 : vector<1x4xf32> to vector<8x4xf32>
    %91 = arith.addf %88, %90 : vector<8x4xf32>
    %cst_88 = arith.constant 0.000000e+00 : f32
    %92 = vector.broadcast %cst_88 : f32 to vector<8x4xf32>
    %93 = arith.maximumf %91, %92 : vector<8x4xf32>
    %c0_89 = arith.constant 0 : index
    %c0_90 = arith.constant 0 : index
    %c0_91 = arith.constant 0 : index
    %c4_92 = arith.constant 4 : index
    %94 = vector.load %arg8[%c0_89, %c0_90, %c0_91, %c4_92] : memref<1x1x8x128xf32, #tpu.memory_space<vmem>>, vector<1x1x8x4xf32>
    %95 = vector.shape_cast %94 : vector<1x1x8x4xf32> to vector<8x4xf32>
    %96 = vector.shape_cast %93 : vector<8x4xf32> to vector<1x1x8x4xf32>
    tpu.vector_store %arg8[%c0_89, %c0_90, %c0_91, %c4_92], %96 {strides = array<i32>} : memref<1x1x8x128xf32, #tpu.memory_space<vmem>>, vector<1x1x8x4xf32>,
    return
  }
  func.func @transform_0(%arg0: i32, %arg1: i32) -> (i32, i32, i32, i32) {
    %c2_i32 = arith.constant 2 : i32
    %0 = arith.muli %c2_i32, %arg1 : i32
    %c0_i32 = arith.constant 0 : i32
    %1 = arith.addi %0, %c0_i32 : i32
    %c0_i32_0 = arith.constant 0 : i32
    %c0_i32_1 = arith.constant 0 : i32
    %c0_i32_2 = arith.constant 0 : i32
    return %arg0, %1, %c0_i32_0, %c0_i32_1 : i32, i32, i32, i32
  }
  func.func @transform_1(%arg0: i32, %arg1: i32) -> (i32, i32, i32, i32) {
    %c2_i32 = arith.constant 2 : i32
    %0 = arith.muli %c2_i32, %arg1 : i32
    %c1_i32 = arith.constant 1 : i32
    %1 = arith.addi %0, %c1_i32 : i32
    %c0_i32 = arith.constant 0 : i32
    %c0_i32_0 = arith.constant 0 : i32
    %c0_i32_1 = arith.constant 0 : i32
    return %arg0, %1, %c0_i32, %c0_i32_0 : i32, i32, i32, i32
  }
  func.func @transform_2(%arg0: i32, %arg1: i32) -> (i32, i32, i32, i32) {
    %c2_i32 = arith.constant 2 : i32
    %0 = arith.muli %c2_i32, %arg1 : i32
    %c2_i32_0 = arith.constant 2 : i32
    %1 = arith.addi %0, %c2_i32_0 : i32
    %c0_i32 = arith.constant 0 : i32
    %c0_i32_1 = arith.constant 0 : i32
    %c0_i32_2 = arith.constant 0 : i32
    return %arg0, %1, %c0_i32, %c0_i32_1 : i32, i32, i32, i32
  }
  func.func @transform_3(%arg0: i32, %arg1: i32) -> (i32, i32, i32) {
    %c0_i32 = arith.constant 0 : i32
    %c0_i32_0 = arith.constant 0 : i32
    %c0_i32_1 = arith.constant 0 : i32
    %c0_i32_2 = arith.constant 0 : i32
    return %c0_i32, %c0_i32_0, %c0_i32_1 : i32, i32, i32
  }
  func.func @transform_4(%arg0: i32, %arg1: i32) -> (i32, i32) {
    %c0_i32 = arith.constant 0 : i32
    %c0_i32_0 = arith.constant 0 : i32
    %c0_i32_1 = arith.constant 0 : i32
    return %c0_i32, %c0_i32_0 : i32, i32
  }
  func.func @transform_5(%arg0: i32, %arg1: i32) -> (i32, i32) {
    %c0_i32 = arith.constant 0 : i32
    %c0_i32_0 = arith.constant 0 : i32
    %c0_i32_1 = arith.constant 0 : i32
    return %c0_i32, %c0_i32_0 : i32, i32
  }
  func.func @transform_6(%arg0: i32, %arg1: i32) -> (i32, i32, i32, i32) {
    %c0_i32 = arith.constant 0 : i32
    %c0_i32_0 = arith.constant 0 : i32
    %c0_i32_1 = arith.constant 0 : i32
    return %arg0, %arg1, %c0_i32, %c0_i32_0 : i32, i32, i32, i32
  }
}

</mosaic_0001>

<llo_original>
// kernel: tpu_custom_call.1
$region0: #{tpu_custom_call.1}
  #allocation0 [shape = 'u32[]', space=smem, size = 0x4, offset = 0x4, fixed_abs, tag = 'smem constant byte address 0x4 - core index']
  #allocation1 [shape = 'u32[72,128]{1,0:T(1,128)}', space=vmem, size = 0x9000, scoped, tag = 'internal scratch']
  %s0 = inlined_call_operand.vmem [shape: f32[2,18,18,4], index: 0, kind: input, shape index: {}]
  %s1 = inlined_call_operand.vmem [shape: f32[2,18,18,4], index: 1, kind: input, shape index: {}]
  %s2 = inlined_call_operand.vmem [shape: f32[2,18,18,4], index: 2, kind: input, shape index: {}]
  %s3 = inlined_call_operand.vmem [shape: bf16[9,4,128], index: 3, kind: input, shape index: {}]
  %s4 = inlined_call_operand.vmem [shape: f32[1,128], index: 4, kind: input, shape index: {}]
  %s5 = inlined_call_operand.vmem [shape: f32[1,128], index: 5, kind: input, shape index: {}]
  %s6 = inlined_call_operand.hbm [shape: f32[2,8,8,128], index: 6, kind: output, shape index: {}]
  %s7 = sld [smem:[#allocation0]]
  $region57: #{tpu_custom_call.1} parent=0
    _
  %s9 = ssub.s32 1, %s7
  %s10 = scalar_select 0, %s9, %s7
  $region1: #{tpu_custom_call.1} parent=0
    #allocation2 [shape = 'u8[8192]{0}', space=vmem, size = 0x2000, scoped, tag = 'output window, operand 0']
    #allocation3 [shape = 's32[2]{0}', space=sflag, size = 0x8, scoped, tag = 'scoped memory for tpu_custom_call.1']
    %11 = vsyncpa [#allocation3], 0
    %s12 = scalar_lea.sflag [#allocation3], 1
    %13 = vsyncpa %s12, 0
    loop: start=0, step=1, limit=18
    $region2: #{tpu_custom_call.1} parent=1 // loop_pre_header
      _
    $region3: #{tpu_custom_call.1} parent=1 // loop_header
      %s15 = sphi 0, %s19
      %p16 = scmp.ge.s32.totalorder %s15, 18
      %s22 = sphi 0, %s34
      %s23 = sphi 0, %s30
      %s24 = sphi 0, %s22
      %s25 = sphi 0, %s23
      %s26 = sphi 0, %s24
      %s27 = sphi 0, %s25
      %s41 = sphi 0, %s43
      %s44 = sphi 0, %s41
      %s45 = sphi 0, %s44
      %s61 = sphi 0, %s45
      %s73 = sphi 0, %s75
      %s76 = sphi 0, %s73
      %s77 = sphi 0, %s76
      %s93 = sphi 0, %s77
      %s105 = sphi 0, %s107
      %s108 = sphi 0, %s105
      %s109 = sphi 0, %s108
      %s125 = sphi 0, %s109
      %s129 = sphi 0, %s129
      %s131 = sphi 0, %s129
      %s132 = sphi 0, %s131
      %s146 = sphi 0, %s132
      %s150 = sphi 0, %s150
      %s152 = sphi 0, %s150
      %s153 = sphi 0, %s152
      %s167 = sphi 0, %s153
      %s171 = sphi 0, %s171
      %s173 = sphi 0, %s171
      %s174 = sphi 0, %s173
      %s188 = sphi 0, %s174
      %s196 = sphi 0, %s198
      %s199 = sphi 0, %s196
      %s200 = sphi 0, %s199
      %s216 = sphi 0, %s200
    $region4: #{tpu_custom_call.1} parent=1 // loop_header_branch
      %18 = sbr.rel (%p16) target = $region8
    $region5: #{tpu_custom_call.1} parent=1 // loop_body
      %s20 = ssub.s32 %s15, 1
      %s21 = ssub.s32 %s15, 2
      %s28 = sadd.s32 1, %s23
      %p29 = scmp.ge.s32.totalorder %s28, 8
      %s30 = scalar_select %p29, 0, %s28
      %s31 = sadd.s32 1, %s22
      %s32 = scalar_select %p29, %s31, %s22
      %p33 = scmp.ge.s32.totalorder %s32, 2
      %s34 = scalar_select %p33, 0, %s32
      %s35 = smul.u32 %s23, 2
      %s36 = smul.u32 %s30, 2
      %s37 = ssub.s32 %s22, %s34
      %s38 = ssub.s32 %s35, %s36
      %s39 = sor.u32 %s37, %s38
      %p40 = scmp.eq.s32.totalorder %s39, 0
      %s42 = sadd.s32 %s41, 1
      %s43 = scalar_select %p40, %s41, %s42
      %p46 = pneg %p40
      %p47 = scmp.eq.s32.totalorder %s15, 15
      %p48 = por %p46, %p47
      %p49 = scmp.ne.s32.totalorder %s41, %s44
      %p50 = scmp.eq.s32.totalorder %s15, 0
      %p51 = por %p49, %p50
      %p52 = scmp.ne.s32.totalorder %s41, %s44
      %p53 = scmp.eq.s32.totalorder %s20, 15
      %p54 = por %p52, %p53
      %p55 = scmp.ne.s32.totalorder %s44, %s45
      %p56 = scmp.eq.s32.totalorder %s20, 0
      %p57 = por %p55, %p56
      %p58 = scmp.ne.s32.totalorder %s44, %s45
      %p59 = scmp.eq.s32.totalorder %s21, 15
      %p60 = por %p58, %p59
      %p62 = scmp.ne.s32.totalorder %s45, %s61
      %p63 = scmp.eq.s32.totalorder %s21, 0
      %p64 = por %p62, %p63
      %s65 = smul.u32 %s23, 2
      %s66 = sadd.s32 %s65, 1
      %s67 = smul.u32 %s30, 2
      %s68 = sadd.s32 %s67, 1
      %s69 = ssub.s32 %s22, %s34
      %s70 = ssub.s32 %s66, %s68
      %s71 = sor.u32 %s69, %s70
      %p72 = scmp.eq.s32.totalorder %s71, 0
      %s74 = sadd.s32 %s73, 1
      %s75 = scalar_select %p72, %s73, %s74
      %p78 = pneg %p72
      %p79 = scmp.eq.s32.totalorder %s15, 15
      %p80 = por %p78, %p79
      %p81 = scmp.ne.s32.totalorder %s73, %s76
      %p82 = scmp.eq.s32.totalorder %s15, 0
      %p83 = por %p81, %p82
      %p84 = scmp.ne.s32.totalorder %s73, %s76
      %p85 = scmp.eq.s32.totalorder %s20, 15
      %p86 = por %p84, %p85
      %p87 = scmp.ne.s32.totalorder %s76, %s77
      %p88 = scmp.eq.s32.totalorder %s20, 0
      %p89 = por %p87, %p88
      %p90 = scmp.ne.s32.totalorder %s76, %s77
      %p91 = scmp.eq.s32.totalorder %s21, 15
      %p92 = por %p90, %p91
      %p94 = scmp.ne.s32.totalorder %s77, %s93
      %p95 = scmp.eq.s32.totalorder %s21, 0
      %p96 = por %p94, %p95
      %s97 = smul.u32 %s23, 2
      %s98 = sadd.s32 %s97, 2
      %s99 = smul.u32 %s30, 2
      %s100 = sadd.s32 %s99, 2
      %s101 = ssub.s32 %s22, %s34
      %s102 = ssub.s32 %s98, %s100
      %s103 = sor.u32 %s101, %s102
      %p104 = scmp.eq.s32.totalorder %s103, 0
      %s106 = sadd.s32 %s105, 1
      %s107 = scalar_select %p104, %s105, %s106
      %p110 = pneg %p104
      %p111 = scmp.eq.s32.totalorder %s15, 15
      %p112 = por %p110, %p111
      %p113 = scmp.ne.s32.totalorder %s105, %s108
      %p114 = scmp.eq.s32.totalorder %s15, 0
      %p115 = por %p113, %p114
      %p116 = scmp.ne.s32.totalorder %s105, %s108
      %p117 = scmp.eq.s32.totalorder %s20, 15
      %p118 = por %p116, %p117
      %p119 = scmp.ne.s32.totalorder %s108, %s109
      %p120 = scmp.eq.s32.totalorder %s20, 0
      %p121 = por %p119, %p120
      %p122 = scmp.ne.s32.totalorder %s108, %s109
      %p123 = scmp.eq.s32.totalorder %s21, 15
      %p124 = por %p122, %p123
      %p126 = scmp.ne.s32.totalorder %s109, %s125
      %p127 = scmp.eq.s32.totalorder %s21, 0
      %p128 = por %p126, %p127
      %s130 = sadd.s32 %s129, 1
      %p133 = scmp.eq.s32.totalorder %s15, 15
      %p134 = scmp.ne.s32.totalorder %s129, %s131
      %p135 = scmp.eq.s32.totalorder %s15, 0
      %p136 = por %p134, %p135
      %p137 = scmp.ne.s32.totalorder %s129, %s131
      %p138 = scmp.eq.s32.totalorder %s20, 15
      %p139 = por %p137, %p138
      %p140 = scmp.ne.s32.totalorder %s131, %s132
      %p141 = scmp.eq.s32.totalorder %s20, 0
      %p142 = por %p140, %p141
      %p143 = scmp.ne.s32.totalorder %s131, %s132
      %p144 = scmp.eq.s32.totalorder %s21, 15
      %p145 = por %p143, %p144
      %p147 = scmp.ne.s32.totalorder %s132, %s146
      %p148 = scmp.eq.s32.totalorder %s21, 0
      %p149 = por %p147, %p148
      %s151 = sadd.s32 %s150, 1
      %p154 = scmp.eq.s32.totalorder %s15, 15
      %p155 = scmp.ne.s32.totalorder %s150, %s152
      %p156 = scmp.eq.s32.totalorder %s15, 0
      %p157 = por %p155, %p156
      %p158 = scmp.ne.s32.totalorder %s150, %s152
      %p159 = scmp.eq.s32.totalorder %s20, 15
      %p160 = por %p158, %p159
      %p161 = scmp.ne.s32.totalorder %s152, %s153
      %p162 = scmp.eq.s32.totalorder %s20, 0
      %p163 = por %p161, %p162
      %p164 = scmp.ne.s32.totalorder %s152, %s153
      %p165 = scmp.eq.s32.totalorder %s21, 15
      %p166 = por %p164, %p165
      %p168 = scmp.ne.s32.totalorder %s153, %s167
      %p169 = scmp.eq.s32.totalorder %s21, 0
      %p170 = por %p168, %p169
      %s172 = sadd.s32 %s171, 1
      %p175 = scmp.eq.s32.totalorder %s15, 15
      %p176 = scmp.ne.s32.totalorder %s171, %s173
      %p177 = scmp.eq.s32.totalorder %s15, 0
      %p178 = por %p176, %p177
      %p179 = scmp.ne.s32.totalorder %s171, %s173
      %p180 = scmp.eq.s32.totalorder %s20, 15
      %p181 = por %p179, %p180
      %p182 = scmp.ne.s32.totalorder %s173, %s174
      %p183 = scmp.eq.s32.totalorder %s20, 0
      %p184 = por %p182, %p183
      %p185 = scmp.ne.s32.totalorder %s173, %s174
      %p186 = scmp.eq.s32.totalorder %s21, 15
      %p187 = por %p185, %p186
      %p189 = scmp.ne.s32.totalorder %s174, %s188
      %p190 = scmp.eq.s32.totalorder %s21, 0
      %p191 = por %p189, %p190
      %s192 = ssub.s32 %s22, %s34
      %s193 = ssub.s32 %s23, %s30
      %s194 = sor.u32 %s192, %s193
      %p195 = scmp.eq.s32.totalorder %s194, 0
      %s197 = sadd.s32 %s196, 1
      %s198 = scalar_select %p195, %s196, %s197
      %p201 = pneg %p195
      %p202 = scmp.eq.s32.totalorder %s15, 15
      %p203 = por %p201, %p202
      %p204 = scmp.ne.s32.totalorder %s196, %s199
      %p205 = scmp.eq.s32.totalorder %s15, 0
      %p206 = por %p204, %p205
      %p207 = scmp.ne.s32.totalorder %s196, %s199
      %p208 = scmp.eq.s32.totalorder %s20, 15
      %p209 = por %p207, %p208
      %p210 = scmp.ne.s32.totalorder %s199, %s200
      %p211 = scmp.eq.s32.totalorder %s20, 0
      %p212 = por %p210, %p211
      %p213 = scmp.ne.s32.totalorder %s199, %s200
      %p214 = scmp.eq.s32.totalorder %s21, 15
      %p215 = por %p213, %p214
      %p217 = scmp.ne.s32.totalorder %s200, %s216
      %p218 = scmp.eq.s32.totalorder %s21, 0
      %p219 = por %p217, %p218
      %p220 = scmp.le.s32.totalorder 1, %s15
      %p221 = scmp.lt.s32.totalorder %s15, 17
      %p222 = pnand %p220, %p221
      %p223 = pneg %p222
      // Predicated region
      $region9: #{tpu_custom_call.1} parent=5 // pred_check
        _
      $region10: #{tpu_custom_call.1} parent=5 // pred_check_branch
        %225 = sbr.rel (%p222) target = $region12
      $region11: #{tpu_custom_call.1} parent=5 // pred_region
        %s226 = ssub.s32 %s15, 1
        // Predicated region
        $region13: #{tpu_custom_call.1} parent=11 // pred_check
          %p227 = pneg %p142
        $region14: #{tpu_custom_call.1} parent=11 // pred_check_branch
          %229 = sbr.rel (%p227) target = $region16
        $region15: #{tpu_custom_call.1} parent=11 // pred_region
          _
        $region16: #{tpu_custom_call.1} parent=11 // pred_fallthru
          _
        // Predicated region
        $region17: #{tpu_custom_call.1} parent=11 // pred_check
          %p230 = pneg %p163
        $region18: #{tpu_custom_call.1} parent=11 // pred_check_branch
          %232 = sbr.rel (%p230) target = $region20
        $region19: #{tpu_custom_call.1} parent=11 // pred_region
          _
        $region20: #{tpu_custom_call.1} parent=11 // pred_fallthru
          _
        // Predicated region
        $region21: #{tpu_custom_call.1} parent=11 // pred_check
          %p233 = pneg %p184
        $region22: #{tpu_custom_call.1} parent=11 // pred_check_branch
          %235 = sbr.rel (%p233) target = $region24
        $region23: #{tpu_custom_call.1} parent=11 // pred_region
          _
        $region24: #{tpu_custom_call.1} parent=11 // pred_fallthru
          _
      $region12: #{tpu_custom_call.1} parent=5 // pred_fallthru
        _
      %p236 = scmp.lt.s32.totalorder %s15, 16
      // Predicated region
      $region25: #{tpu_custom_call.1} parent=5 // pred_check
        %p237 = pneg %p236
      $region26: #{tpu_custom_call.1} parent=5 // pred_check_branch
        %239 = sbr.rel (%p237) target = $region28
      $region27: #{tpu_custom_call.1} parent=5 // pred_region
        // Predicated region
        $region29: #{tpu_custom_call.1} parent=27 // pred_check
          %p240 = pneg %p51
        $region30: #{tpu_custom_call.1} parent=27 // pred_check_branch
          %242 = sbr.rel (%p240) target = $region32
        $region31: #{tpu_custom_call.1} parent=27 // pred_region
          %s243 = smul.u32 %s23, 2
          %p244 = scmp.lt.s32.totalorder %s22, 1
          %s245 = scalar_select %p244, %s22, 1
          %p246 = scmp.lt.s32.totalorder %s243, 17
          %s247 = scalar_select %p246, %s243, 17
          %s248 = smul.addr %s247, 3
          %s249 = smul.addr %s245, 54
          %s250 = sadd.s32 %s248, %s249
          %s251 = smul.addr %s250, 8
          %s252 = scalar_lea.vmem %s0, %s251
          %s253 = smul.u32 %s23, 2
        $region32: #{tpu_custom_call.1} parent=27 // pred_fallthru
          _
        // Predicated region
        $region33: #{tpu_custom_call.1} parent=27 // pred_check
          %p254 = pneg %p83
        $region34: #{tpu_custom_call.1} parent=27 // pred_check_branch
          %256 = sbr.rel (%p254) target = $region36
        $region35: #{tpu_custom_call.1} parent=27 // pred_region
          %s257 = smul.u32 %s23, 2
          %s258 = sadd.s32 %s257, 1
          %p259 = scmp.lt.s32.totalorder %s22, 1
          %s260 = scalar_select %p259, %s22, 1
          %p261 = scmp.lt.s32.totalorder %s258, 17
          %s262 = scalar_select %p261, %s258, 17
          %s263 = smul.addr %s262, 3
          %s264 = smul.addr %s260, 54
          %s265 = sadd.s32 %s263, %s264
          %s266 = smul.addr %s265, 8
          %s267 = scalar_lea.vmem %s1, %s266
          %s268 = smul.u32 %s23, 2
          %s269 = sadd.s32 %s268, 1
        $region36: #{tpu_custom_call.1} parent=27 // pred_fallthru
          _
        // Predicated region
        $region37: #{tpu_custom_call.1} parent=27 // pred_check
          %p270 = pneg %p115
        $region38: #{tpu_custom_call.1} parent=27 // pred_check_branch
          %272 = sbr.rel (%p270) target = $region40
        $region39: #{tpu_custom_call.1} parent=27 // pred_region
          %s273 = smul.u32 %s23, 2
          %s274 = sadd.s32 %s273, 2
          %p275 = scmp.lt.s32.totalorder %s22, 1
          %s276 = scalar_select %p275, %s22, 1
          %p277 = scmp.lt.s32.totalorder %s274, 17
          %s278 = scalar_select %p277, %s274, 17
          %s279 = smul.addr %s278, 3
          %s280 = smul.addr %s276, 54
          %s281 = sadd.s32 %s279, %s280
          %s282 = smul.addr %s281, 8
          %s283 = scalar_lea.vmem %s2, %s282
          %s284 = smul.u32 %s23, 2
          %s285 = sadd.s32 %s284, 2
        $region40: #{tpu_custom_call.1} parent=27 // pred_fallthru
          _
      $region28: #{tpu_custom_call.1} parent=5 // pred_fallthru
        _
      %p286 = scmp.le.s32.totalorder 1, %s15
      %p287 = scmp.lt.s32.totalorder %s15, 17
      %p288 = pnand %p286, %p287
      %p289 = pneg %p288
      // Predicated region
      $region41: #{tpu_custom_call.1} parent=5 // pred_check
        _
      $region42: #{tpu_custom_call.1} parent=5 // pred_check_branch
        %291 = sbr.rel (%p288) target = $region44
      $region43: #{tpu_custom_call.1} parent=5 // pred_region
        %s292 = ssub.s32 %s15, 1
        %s293 = smul.u32 %s25, 2
        %p294 = scmp.lt.s32.totalorder %s24, 1
        %s295 = scalar_select %p294, %s24, 1
        %p296 = scmp.lt.s32.totalorder %s293, 17
        %s297 = scalar_select %p296, %s293, 17
        %s298 = smul.addr %s297, 3
        %s299 = smul.addr %s295, 54
        %s300 = sadd.s32 %s298, %s299
        %s301 = smul.addr %s300, 8
        %s302 = scalar_lea.vmem %s0, %s301
        %p303 = pneg %p57
        %p304 = pneg %p54
        %s305 = smul.u32 %s25, 2
        %s306 = sadd.s32 %s305, 1
        %p307 = scmp.lt.s32.totalorder %s24, 1
        %s308 = scalar_select %p307, %s24, 1
        %p309 = scmp.lt.s32.totalorder %s306, 17
        %s310 = scalar_select %p309, %s306, 17
        %s311 = smul.addr %s310, 3
        %s312 = smul.addr %s308, 54
        %s313 = sadd.s32 %s311, %s312
        %s314 = smul.addr %s313, 8
        %s315 = scalar_lea.vmem %s1, %s314
        %p316 = pneg %p89
        %p317 = pneg %p86
        %s318 = smul.u32 %s25, 2
        %s319 = sadd.s32 %s318, 2
        %p320 = scmp.lt.s32.totalorder %s24, 1
        %s321 = scalar_select %p320, %s24, 1
        %p322 = scmp.lt.s32.totalorder %s319, 17
        %s323 = scalar_select %p322, %s319, 17
        %s324 = smul.addr %s323, 3
        %s325 = smul.addr %s321, 54
        %s326 = sadd.s32 %s324, %s325
        %s327 = smul.addr %s326, 8
        %s328 = scalar_lea.vmem %s2, %s327
        %p329 = pneg %p121
        %p330 = pneg %p118
        %p331 = pneg %p142
        %p332 = pneg %p139
        %p333 = pneg %p163
        %p334 = pneg %p160
        %p335 = pneg %p184
        %p336 = pneg %p181
        %p337 = pneg %p212
        %p338 = pneg %p209
        %s339 = sand.u32 %s199, 1
        %s340 = scalar_lea.sflag [#allocation3], %s339
        %s341 = sand.u32 %s199, 1
        %s342 = smul.addr %s341, 8
        %s343 = scalar_lea.vmem [#allocation2], %s342
        %s344 = smul.u32 %s25, 2
        %p345 = scmp.lt.s32.totalorder %s24, 1
        %s346 = scalar_select %p345, %s24, 1
        %p347 = scmp.lt.s32.totalorder %s344, 17
        %s348 = scalar_select %p347, %s344, 17
        %s349 = smul.addr %s348, 3
        %s350 = smul.addr %s346, 54
        %s351 = sadd.s32 %s349, %s350
        %s352 = smul.addr %s351, 8
        %s353 = scalar_lea.vmem %s0, %s352
        %s354 = smul.u32 %s25, 2
        %s355 = smul.u32 %s25, 2
        %s356 = sadd.s32 %s355, 1
        %p357 = scmp.lt.s32.totalorder %s24, 1
        %s358 = scalar_select %p357, %s24, 1
        %p359 = scmp.lt.s32.totalorder %s356, 17
        %s360 = scalar_select %p359, %s356, 17
        %s361 = smul.addr %s360, 3
        %s362 = smul.addr %s358, 54
        %s363 = sadd.s32 %s361, %s362
        %s364 = smul.addr %s363, 8
        %s365 = scalar_lea.vmem %s1, %s364
        %s366 = smul.u32 %s25, 2
        %s367 = sadd.s32 %s366, 1
        %s368 = smul.u32 %s25, 2
        %s369 = sadd.s32 %s368, 2
        %p370 = scmp.lt.s32.totalorder %s24, 1
        %s371 = scalar_select %p370, %s24, 1
        %p372 = scmp.lt.s32.totalorder %s369, 17
        %s373 = scalar_select %p372, %s369, 17
        %s374 = smul.addr %s373, 3
        %s375 = smul.addr %s371, 54
        %s376 = sadd.s32 %s374, %s375
        %s377 = smul.addr %s376, 8
        %s378 = scalar_lea.vmem %s2, %s377
        %s379 = smul.u32 %s25, 2
        %s380 = sadd.s32 %s379, 2
        %v382 = vld [vmem:[%s353] ss:$2 sm:$0xff]
        %v383 = vpack.c.bf16 %v382, %v382
        %v384 = vld [vmem:[%s3] sm:$0x3]
        %s385 = scalar_lea.vmem %s353, 1
        %v386 = vld [vmem:[%s385] ss:$2 sm:$0xff]
        %v387 = vpack.c.bf16 %v386, %v386
        %s388 = scalar_lea.vmem %s3, 2
        %v389 = vld [vmem:[%s388] sm:$0x3]
        %vm390 = vcmask 31744
        %v392 = vsel %vm390, %v387, 0
        %vm394 = vcmask 1041408
        %v396 = vsel %vm394, %v389, 0
        %398 = vmatpush.bf16.msra.mxu0 0
        %399 = vmatpush.bf16.msra.mxu0 0
        %400 = vmatpush.bf16.msra.mxu0 0
        %401 = vmatpush.bf16.msra.mxu0 0
        %402 = vmatpush.bf16.msra.mxu0 0
        %403 = vmatpush.bf16.msra.mxu0 0
        %404 = vmatpush.bf16.msra.mxu0 0
        %405 = vmatpush.bf16.msra.mxu0 %v396
        %406 = vmatmul.bf16.gmra.mxu0 %v392
        %v407 = vpop.f32.mrf.mxu0
        %v408 = vadd.f32 0.0, %v407
        %v409 = vpop.f32.mrf.mxu0
        %410 = vdwg.mxu0
        %v412 = vsel %vm390, %v383, 0
        %v415 = vsel %vm394, %v384, 0
        %417 = vmatpush.bf16.msra.mxu0 0
        %418 = vmatpush.bf16.msra.mxu0 0
        %419 = vmatpush.bf16.msra.mxu0 0
        %420 = vmatpush.bf16.msra.mxu0 0
        %421 = vmatpush.bf16.msra.mxu0 0
        %422 = vmatpush.bf16.msra.mxu0 0
        %423 = vmatpush.bf16.msra.mxu0 0
        %424 = vmatpush.bf16.msra.mxu0 %v415
        %425 = vmatmul.bf16.gmra.mxu0 %v412
        %v426 = vpop.f32.mrf.mxu0
        %v427 = vadd.f32 %v408, %v426
        %v428 = vpop.f32.mrf.mxu0
        %429 = vdwg.mxu0
        %s430 = scalar_lea.vmem %s353, 2
        %v431 = vld [vmem:[%s430] ss:$2 sm:$0xff]
        %v432 = vpack.c.bf16 %v431, %v431
        %s433 = scalar_lea.vmem %s3, 4
        %v434 = vld [vmem:[%s433] sm:$0x3]
        %v436 = vsel %vm390, %v432, 0
        %v439 = vsel %vm394, %v434, 0
        %441 = vmatpush.bf16.msra.mxu0 0
        %442 = vmatpush.bf16.msra.mxu0 0
        %443 = vmatpush.bf16.msra.mxu0 0
        %444 = vmatpush.bf16.msra.mxu0 0
        %445 = vmatpush.bf16.msra.mxu0 0
        %446 = vmatpush.bf16.msra.mxu0 0
        %447 = vmatpush.bf16.msra.mxu0 0
        %448 = vmatpush.bf16.msra.mxu0 %v439
        %449 = vmatmul.bf16.gmra.mxu0 %v436
        %v450 = vpop.f32.mrf.mxu0
        %v451 = vadd.f32 0.0, %v450
        %v452 = vpop.f32.mrf.mxu0
        %453 = vdwg.mxu0
        %v454 = vadd.f32 %v427, %v451
        %v455 = vld [vmem:[%s365] ss:$2 sm:$0xff]
        %v456 = vpack.c.bf16 %v455, %v455
        %s457 = scalar_lea.vmem %s3, 6
        %v458 = vld [vmem:[%s457] sm:$0x3]
        %v460 = vsel %vm390, %v456, 0
        %v463 = vsel %vm394, %v458, 0
        %465 = vmatpush.bf16.msra.mxu0 0
        %466 = vmatpush.bf16.msra.mxu0 0
        %467 = vmatpush.bf16.msra.mxu0 0
        %468 = vmatpush.bf16.msra.mxu0 0
        %469 = vmatpush.bf16.msra.mxu0 0
        %470 = vmatpush.bf16.msra.mxu0 0
        %471 = vmatpush.bf16.msra.mxu0 0
        %472 = vmatpush.bf16.msra.mxu0 %v463
        %473 = vmatmul.bf16.gmra.mxu0 %v460
        %v474 = vpop.f32.mrf.mxu0
        %v475 = vadd.f32 0.0, %v474
        %v476 = vpop.f32.mrf.mxu0
        %477 = vdwg.mxu0
        %v478 = vadd.f32 %v454, %v475
        %s479 = scalar_lea.vmem %s365, 1
        %v480 = vld [vmem:[%s479] ss:$2 sm:$0xff]
        %v481 = vpack.c.bf16 %v480, %v480
        %s482 = scalar_lea.vmem %s3, 8
        %v483 = vld [vmem:[%s482] sm:$0x3]
        %v485 = vsel %vm390, %v481, 0
        %v488 = vsel %vm394, %v483, 0
        %490 = vmatpush.bf16.msra.mxu0 0
        %491 = vmatpush.bf16.msra.mxu0 0
        %492 = vmatpush.bf16.msra.mxu0 0
        %493 = vmatpush.bf16.msra.mxu0 0
        %494 = vmatpush.bf16.msra.mxu0 0
        %495 = vmatpush.bf16.msra.mxu0 0
        %496 = vmatpush.bf16.msra.mxu0 0
        %497 = vmatpush.bf16.msra.mxu0 %v488
        %498 = vmatmul.bf16.gmra.mxu0 %v485
        %v499 = vpop.f32.mrf.mxu0
        %v500 = vadd.f32 0.0, %v499
        %v501 = vpop.f32.mrf.mxu0
        %502 = vdwg.mxu0
        %v503 = vadd.f32 %v478, %v500
        %s504 = scalar_lea.vmem %s365, 2
        %v505 = vld [vmem:[%s504] ss:$2 sm:$0xff]
        %v506 = vpack.c.bf16 %v505, %v505
        %s507 = scalar_lea.vmem %s3, 10
        %v508 = vld [vmem:[%s507] sm:$0x3]
        %v510 = vsel %vm390, %v506, 0
        %v513 = vsel %vm394, %v508, 0
        %515 = vmatpush.bf16.msra.mxu0 0
        %516 = vmatpush.bf16.msra.mxu0 0
        %517 = vmatpush.bf16.msra.mxu0 0
        %518 = vmatpush.bf16.msra.mxu0 0
        %519 = vmatpush.bf16.msra.mxu0 0
        %520 = vmatpush.bf16.msra.mxu0 0
        %521 = vmatpush.bf16.msra.mxu0 0
        %522 = vmatpush.bf16.msra.mxu0 %v513
        %523 = vmatmul.bf16.gmra.mxu0 %v510
        %v524 = vpop.f32.mrf.mxu0
        %v525 = vadd.f32 0.0, %v524
        %v526 = vpop.f32.mrf.mxu0
        %527 = vdwg.mxu0
        %v528 = vadd.f32 %v503, %v525
        %v529 = vld [vmem:[%s378] ss:$2 sm:$0xff]
        %v530 = vpack.c.bf16 %v529, %v529
        %s531 = scalar_lea.vmem %s3, 12
        %v532 = vld [vmem:[%s531] sm:$0x3]
        %v534 = vsel %vm390, %v530, 0
        %v537 = vsel %vm394, %v532, 0
        %539 = vmatpush.bf16.msra.mxu0 0
        %540 = vmatpush.bf16.msra.mxu0 0
        %541 = vmatpush.bf16.msra.mxu0 0
        %542 = vmatpush.bf16.msra.mxu0 0
        %543 = vmatpush.bf16.msra.mxu0 0
        %544 = vmatpush.bf16.msra.mxu0 0
        %545 = vmatpush.bf16.msra.mxu0 0
        %546 = vmatpush.bf16.msra.mxu0 %v537
        %547 = vmatmul.bf16.gmra.mxu0 %v534
        %v548 = vpop.f32.mrf.mxu0
        %v549 = vadd.f32 0.0, %v548
        %v550 = vpop.f32.mrf.mxu0
        %551 = vdwg.mxu0
        %v552 = vadd.f32 %v528, %v549
        %s553 = scalar_lea.vmem %s378, 1
        %v554 = vld [vmem:[%s553] ss:$2 sm:$0xff]
        %v555 = vpack.c.bf16 %v554, %v554
        %s556 = scalar_lea.vmem %s3, 14
        %v557 = vld [vmem:[%s556] sm:$0x3]
        %v559 = vsel %vm390, %v555, 0
        %v562 = vsel %vm394, %v557, 0
        %564 = vmatpush.bf16.msra.mxu0 0
        %565 = vmatpush.bf16.msra.mxu0 0
        %566 = vmatpush.bf16.msra.mxu0 0
        %567 = vmatpush.bf16.msra.mxu0 0
        %568 = vmatpush.bf16.msra.mxu0 0
        %569 = vmatpush.bf16.msra.mxu0 0
        %570 = vmatpush.bf16.msra.mxu0 0
        %571 = vmatpush.bf16.msra.mxu0 %v562
        %572 = vmatmul.bf16.gmra.mxu0 %v559
        %v573 = vpop.f32.mrf.mxu0
        %v574 = vadd.f32 0.0, %v573
        %v575 = vpop.f32.mrf.mxu0
        %576 = vdwg.mxu0
        %v577 = vadd.f32 %v552, %v574
        %s578 = scalar_lea.vmem %s378, 2
        %v579 = vld [vmem:[%s578] ss:$2 sm:$0xff]
        %v580 = vpack.c.bf16 %v579, %v579
        %s581 = scalar_lea.vmem %s3, 16
        %v582 = vld [vmem:[%s581] sm:$0x3]
        %v584 = vsel %vm390, %v580, 0
        %v587 = vsel %vm394, %v582, 0
        %589 = vmatpush.bf16.msra.mxu0 0
        %590 = vmatpush.bf16.msra.mxu0 0
        %591 = vmatpush.bf16.msra.mxu0 0
        %592 = vmatpush.bf16.msra.mxu0 0
        %593 = vmatpush.bf16.msra.mxu0 0
        %594 = vmatpush.bf16.msra.mxu0 0
        %595 = vmatpush.bf16.msra.mxu0 0
        %596 = vmatpush.bf16.msra.mxu0 %v587
        %597 = vmatmul.bf16.gmra.mxu0 %v584
        %v598 = vpop.f32.mrf.mxu0
        %v599 = vadd.f32 0.0, %v598
        %v600 = vpop.f32.mrf.mxu0
        %601 = vdwg.mxu0
        %v602 = vadd.f32 %v577, %v599
        %v603 = vld [vmem:[%s4] sm:$0x1]
        %v604 = vld [vmem:[%s5] sm:$0x1]
        %v606 = vperm.slane %v603, 0
        %v608 = vmul.f32 %v602, %v606
        %v610 = vperm.slane %v604, 0
        %v612 = vadd.f32 %v608, %v610
        %v613 = vmax.f32 %v612, 0.0
        %614 = vst [vmem:[%s343] sm:$0xff] %v613
        %v615 = vld [vmem:[%s479] ss:$2 sm:$0xff]
        %v616 = vld [vmem:[%s504] ss:$2 sm:$0xff]
        %v617 = vld [vmem:[%s553] ss:$2 sm:$0xff]
        %v618 = vld [vmem:[%s578] ss:$2 sm:$0xff]
        %v619 = vmax.f32 %v615, %v616
        %v620 = vmax.f32 %v617, %v618
        %v621 = vmax.f32 %v619, %v620
        %622 = vrot.lane.b32.xlu0 %v606, 124
        %v623 = vpop.permute.xlu0 %622
        %v625 = vmul.f32 %v621, %v623
        %626 = vrot.lane.b32.xlu0 %v610, 124
        %v627 = vpop.permute.xlu0 %626
        %v629 = vadd.f32 %v625, %v627
        %v630 = vmax.f32 %v629, 0.0
        %632 = vrot.lane.b32.xlu0 %v630, 4
        %v633 = vpop.permute.xlu0 %632
        %vm635 = vcmask 64544
        %636 = vst.msk [vmem:[%s343] sm:$0xff] %vm635, %v633
        %s637 = sand.u32 %s199, 1
        %s638 = scalar_lea.sflag [#allocation3], %s637
        %s639 = sand.u32 %s199, 1
        %s640 = smul.addr %s639, 8
        %s641 = scalar_lea.vmem [#allocation2], %s640
        // Predicated region
        $region45: #{tpu_custom_call.1} parent=43 // pred_check
          %p642 = pneg %p209
        $region46: #{tpu_custom_call.1} parent=43 // pred_check_branch
          %644 = sbr.rel (%p642) target = $region48
        $region47: #{tpu_custom_call.1} parent=43 // pred_region
          %646 = vsyncadd %s638, 0
          %s647 = smul.addr %s24, 8
          %s648 = sadd.s32 %s25, %s647
          %s649 = smul.addr %s648, 8
          %s650 = scalar_lea.hbm %s6, %s649
          %s652 = sshll.u32 %s641, 4
          %s653 = int_to_ptr.vmem [resolvable:$true] %s652
          %s654 = sshll.u32 %s650, 4
          %s655 = int_to_ptr.hbm [resolvable:$true] %s654
          %657 = dma.vmem_to_hbm [thread:$0]  %s653, 128, %s655, %s638
        $region48: #{tpu_custom_call.1} parent=43 // pred_fallthru
          _
      $region44: #{tpu_custom_call.1} parent=5 // pred_fallthru
        _
      %p658 = scmp.le.s32.totalorder 2, %s15
      // Predicated region
      $region49: #{tpu_custom_call.1} parent=5 // pred_check
        %p659 = pneg %p658
      $region50: #{tpu_custom_call.1} parent=5 // pred_check_branch
        %661 = sbr.rel (%p659) target = $region52
      $region51: #{tpu_custom_call.1} parent=5 // pred_region
        %s662 = ssub.s32 %s15, 2
        // Predicated region
        $region53: #{tpu_custom_call.1} parent=51 // pred_check
          %p663 = pneg %p215
        $region54: #{tpu_custom_call.1} parent=51 // pred_check_branch
          %665 = sbr.rel (%p663) target = $region56
        $region55: #{tpu_custom_call.1} parent=51 // pred_region
          %s666 = sand.u32 %s200, 1
          %s667 = scalar_lea.sflag [#allocation3], %s666
          %s668 = sand.u32 %s200, 1
          %s669 = smul.addr %s668, 8
          %s670 = scalar_lea.vmem [#allocation2], %s669
          %672 = dma.done %s667, 128
        $region56: #{tpu_custom_call.1} parent=51 // pred_fallthru
          _
      $region52: #{tpu_custom_call.1} parent=5 // pred_fallthru
        _
    $region6: #{tpu_custom_call.1} parent=1 // loop_footer
      %s19 = sadd.s32 1, %s15
    $region7: #{tpu_custom_call.1} parent=1 // loop_footer_branch
      %14 = sbr.rel target = $region3
    $region8: #{tpu_custom_call.1} parent=1 // loop_exit
      _
    %673 = vsyncpa [#allocation3], 1
    %s674 = scalar_lea.sflag [#allocation3], 1
    %675 = vsyncpa %s674, 1

</llo_original>
